<compile_context>
chip_gen: v7x
topology: tpu7x:2x2x1
jax: 0.10.0
libtpu: 0.0.40
codegen_flags: <defaults>
</compile_context>

<pallas_src>
import functools

import jax
import jax.numpy as jnp
from jax.experimental import pallas as pl
from jax.experimental.pallas import tpu as pltpu


def _moving_avg_kernel(x_ref, o_ref, xp_ref, *, seq_len, channels, kernel_size,
                       stride, pad, l_out):
    """x_ref: (L, C) one batch; o_ref: (L_out, C); xp_ref: (L + 2*pad, C) VMEM scratch."""
    # --- Fused replicate padding: padded sequence exists only in VMEM. ---
    if pad > 0:
        first_row = x_ref[0:1, :]                        # (1, C)
        last_row = x_ref[seq_len - 1:seq_len, :]         # (1, C)
        xp_ref[0:pad, :] = jnp.broadcast_to(first_row, (pad, channels))
        xp_ref[pad + seq_len:pad + seq_len + pad, :] = jnp.broadcast_to(
            last_row, (pad, channels))
    xp_ref[pad:pad + seq_len, :] = x_ref[...]

    # --- AvgPool1d over time: K-term accumulate in f32 (static unroll, K is small). ---
    acc = jnp.zeros((l_out, channels), jnp.float32)
    for k in range(kernel_size):
        if stride == 1:
            window = xp_ref[pl.ds(k, l_out), :]
        else:
            # TODO(synk): for stride > 1 a contiguous load + post-downsample would avoid
            # sublane-strided reads; the strided ds is kept here for simplicity.
            window = xp_ref[pl.ds(k, l_out, stride=stride), :]
        acc = acc + window.astype(jnp.float32)
    o_ref[...] = (acc * (1.0 / kernel_size)).astype(o_ref.dtype)


def moving_avg(x, kernel_size, stride):
    """x: (B, L, C) -> (B, L_out, C), replicating PyTorch moving_avg.forward."""
    B, L, C = x.shape
    assert kernel_size >= 1 and stride >= 1
    pad = (kernel_size - 1) // 2
    L_pad = L + 2 * pad
    assert L_pad >= kernel_size, "sequence too short for this kernel_size"
    L_out = (L_pad - kernel_size) // stride + 1

    kernel = functools.partial(
        _moving_avg_kernel, seq_len=L, channels=C, kernel_size=kernel_size,
        stride=stride, pad=pad, l_out=L_out)

    # Raise the scoped-VMEM limit only when the per-batch working set needs it
    # (double-buffered input + output blocks + padded scratch).
    itemsize = jnp.dtype(x.dtype).itemsize
    vmem_need = (2 * L * C + 2 * L_out * C + L_pad * C) * itemsize
    vmem_limit = None
    if vmem_need > 12 * 1024 * 1024:
        vmem_limit = min(int(vmem_need * 3 // 2), 100 * 1024 * 1024)

    return pl.pallas_call(
        kernel,
        out_shape=jax.ShapeDtypeStruct((B, L_out, C), x.dtype),
        grid_spec=pltpu.PrefetchScalarGridSpec(
            num_scalar_prefetch=0,
            grid=(B,),
            # Batch dim squeezed out of the kernel refs -> 2-D (L, C)/(L_out, C) views.
            in_specs=[pl.BlockSpec((None, L, C), lambda b: (b, 0, 0))],
            out_specs=pl.BlockSpec((None, L_out, C), lambda b: (b, 0, 0)),
            scratch_shapes=[pltpu.VMEM((L_pad, C), x.dtype)],
        ),
        compiler_params=pltpu.CompilerParams(
            dimension_semantics=("parallel",),
            vmem_limit_bytes=vmem_limit,
        ),
    )(x)


def _moving_avg_ref(x, kernel_size, stride):
    """Pure-JAX reference mirroring the PyTorch code, for verification."""
    B, L, C = x.shape
    pad = (kernel_size - 1) // 2
    front = jnp.repeat(x[:, 0:1, :], pad, axis=1)
    end = jnp.repeat(x[:, L - 1:L, :], pad, axis=1)
    xp = jnp.concatenate([front, x, end], axis=1)
    L_pad = L + 2 * pad
    L_out = (L_pad - kernel_size) // stride + 1
    outs = []
    for t in range(L_out):
        outs.append(jnp.mean(xp[:, t * stride:t * stride + kernel_size, :], axis=1))
    return jnp.stack(outs, axis=1)


if __name__ == "__main__":
    key = jax.random.PRNGKey(0)
    B, L, C = 2, 8, 32          # (batch, seq, hidden)
    kernel_size, stride = 5, 1  # typical series-decomposition settings

    x = jax.random.normal(key, (B, L, C), dtype=jnp.float32)

    out = moving_avg(x, kernel_size, stride)
    out = jax.block_until_ready(out)

    ref = _moving_avg_ref(x, kernel_size, stride)
    assert out.shape == ref.shape, (out.shape, ref.shape)
    assert jnp.max(jnp.abs(out - ref)) < 1e-5

    print("KERNEL_OK")
</pallas_src>

<mosaic_0001>
module attributes {stable_mosaic.version = 11 : i64} {
  func.func @_moving_avg_kernel(%arg0: i32, %arg1: memref<1x8x32xf32, #tpu.memory_space<vmem>>, %arg2: memref<1x8x32xf32, #tpu.memory_space<vmem>>, %arg3: memref<12x32xf32, #tpu.memory_space<vmem>>) attributes {dimension_semantics = [#tpu.dimension_semantics<parallel>], iteration_bounds = array<i64: 2>, scalar_prefetch = 0 : i64, scratch_operands = 1 : i64, tpu.core_type = #tpu.core_type<tc>, window_params = [{transform_indices = @transform_0, window_bounds = array<i64: 1, 8, 32>}, {transform_indices = @transform_1, window_bounds = array<i64: 1, 8, 32>}]} {
    %c0 = arith.constant 0 : index
    %c0_0 = arith.constant 0 : index
    %c0_1 = arith.constant 0 : index
    %0 = vector.load %arg1[%c0, %c0_0, %c0_1] : memref<1x8x32xf32, #tpu.memory_space<vmem>>, vector<1x1x32xf32>
    %1 = vector.shape_cast %0 : vector<1x1x32xf32> to vector<1x32xf32>
    %c0_2 = arith.constant 0 : index
    %c7 = arith.constant 7 : index
    %c0_3 = arith.constant 0 : index
    %2 = vector.load %arg1[%c0_2, %c7, %c0_3] : memref<1x8x32xf32, #tpu.memory_space<vmem>>, vector<1x1x32xf32>
    %3 = vector.shape_cast %2 : vector<1x1x32xf32> to vector<1x32xf32>
    %4 = vector.shape_cast %1 : vector<1x32xf32> to vector<1x32xf32>
    %5 = vector.broadcast %4 : vector<1x32xf32> to vector<2x32xf32>
    %c0_4 = arith.constant 0 : index
    %c0_5 = arith.constant 0 : index
    %6 = vector.load %arg3[%c0_4, %c0_5] : memref<12x32xf32, #tpu.memory_space<vmem>>, vector<2x32xf32>
    tpu.vector_store %arg3[%c0_4, %c0_5], %5 {strides = array<i32>} : memref<12x32xf32, #tpu.memory_space<vmem>>, vector<2x32xf32>,
    %7 = vector.shape_cast %3 : vector<1x32xf32> to vector<1x32xf32>
    %8 = vector.broadcast %7 : vector<1x32xf32> to vector<2x32xf32>
    %c10 = arith.constant 10 : index
    %c0_6 = arith.constant 0 : index
    %9 = vector.load %arg3[%c10, %c0_6] : memref<12x32xf32, #tpu.memory_space<vmem>>, vector<2x32xf32>
    tpu.vector_store %arg3[%c10, %c0_6], %8 {strides = array<i32>} : memref<12x32xf32, #tpu.memory_space<vmem>>, vector<2x32xf32>,
    %c0_7 = arith.constant 0 : index
    %c0_8 = arith.constant 0 : index
    %c0_9 = arith.constant 0 : index
    %10 = vector.load %arg1[%c0_7, %c0_8, %c0_9] : memref<1x8x32xf32, #tpu.memory_space<vmem>>, vector<1x8x32xf32>
    %11 = vector.shape_cast %10 : vector<1x8x32xf32> to vector<8x32xf32>
    %c2 = arith.constant 2 : index
    %c0_10 = arith.constant 0 : index
    %12 = vector.load %arg3[%c2, %c0_10] : memref<12x32xf32, #tpu.memory_space<vmem>>, vector<8x32xf32>
    tpu.vector_store %arg3[%c2, %c0_10], %11 {strides = array<i32>} : memref<12x32xf32, #tpu.memory_space<vmem>>, vector<8x32xf32>,
    %cst = arith.constant 0.000000e+00 : f32
    %13 = vector.broadcast %cst : f32 to vector<8x32xf32>
    %c0_11 = arith.constant 0 : index
    %c0_12 = arith.constant 0 : index
    %14 = vector.load %arg3[%c0_11, %c0_12] : memref<12x32xf32, #tpu.memory_space<vmem>>, vector<8x32xf32>
    %15 = arith.addf %13, %14 : vector<8x32xf32>
    %c1 = arith.constant 1 : index
    %c0_13 = arith.constant 0 : index
    %16 = vector.load %arg3[%c1, %c0_13] : memref<12x32xf32, #tpu.memory_space<vmem>>, vector<8x32xf32>
    %17 = arith.addf %15, %16 : vector<8x32xf32>
    %c2_14 = arith.constant 2 : index
    %c0_15 = arith.constant 0 : index
    %18 = vector.load %arg3[%c2_14, %c0_15] : memref<12x32xf32, #tpu.memory_space<vmem>>, vector<8x32xf32>
    %19 = arith.addf %17, %18 : vector<8x32xf32>
    %c3 = arith.constant 3 : index
    %c0_16 = arith.constant 0 : index
    %20 = vector.load %arg3[%c3, %c0_16] : memref<12x32xf32, #tpu.memory_space<vmem>>, vector<8x32xf32>
    %21 = arith.addf %19, %20 : vector<8x32xf32>
    %c4 = arith.constant 4 : index
    %c0_17 = arith.constant 0 : index
    %22 = vector.load %arg3[%c4, %c0_17] : memref<12x32xf32, #tpu.memory_space<vmem>>, vector<8x32xf32>
    %23 = arith.addf %21, %22 : vector<8x32xf32>
    %cst_18 = arith.constant 2.000000e-01 : f32
    %24 = vector.broadcast %cst_18 : f32 to vector<8x32xf32>
    %25 = arith.mulf %23, %24 : vector<8x32xf32>
    %c0_19 = arith.constant 0 : index
    %c0_20 = arith.constant 0 : index
    %c0_21 = arith.constant 0 : index
    %26 = vector.load %arg2[%c0_19, %c0_20, %c0_21] : memref<1x8x32xf32, #tpu.memory_space<vmem>>, vector<1x8x32xf32>
    %27 = vector.shape_cast %26 : vector<1x8x32xf32> to vector<8x32xf32>
    %28 = vector.shape_cast %25 : vector<8x32xf32> to vector<1x8x32xf32>
    tpu.vector_store %arg2[%c0_19, %c0_20, %c0_21], %28 {strides = array<i32>} : memref<1x8x32xf32, #tpu.memory_space<vmem>>, vector<1x8x32xf32>,
    return
  }
  func.func @transform_0(%arg0: i32) -> (i32, i32, i32) {
    %c0_i32 = arith.constant 0 : i32
    %c0_i32_0 = arith.constant 0 : i32
    %c0_i32_1 = arith.constant 0 : i32
    return %arg0, %c0_i32, %c0_i32_0 : i32, i32, i32
  }
  func.func @transform_1(%arg0: i32) -> (i32, i32, i32) {
    %c0_i32 = arith.constant 0 : i32
    %c0_i32_0 = arith.constant 0 : i32
    %c0_i32_1 = arith.constant 0 : i32
    return %arg0, %c0_i32, %c0_i32_0 : i32, i32, i32
  }
}

</mosaic_0001>

<llo_original>
// kernel: tpu_custom_call.1
$region0: #{tpu_custom_call.1}
  #allocation0 [shape = 'u32[]', space=smem, size = 0x4, offset = 0x4, fixed_abs, tag = 'smem constant byte address 0x4 - core index']
  #allocation1 [shape = 'u32[144,128]{1,0:T(1,128)}', space=vmem, size = 0x12000, scoped, tag = 'internal scratch']
  #allocation2 [shape = 'f32[12,32]{1,0:T(8,128)}', space=vmem, size = 0x2000, scoped, tag = 'scratch operand']
  %s0 = inlined_call_operand.hbm [shape: f32[2,8,32], index: 0, kind: input, shape index: {}]
  %s1 = inlined_call_operand.hbm [shape: f32[2,8,32], index: 1, kind: output, shape index: {}]
  %s2 = sld [smem:[#allocation0]]
  $region41: #{tpu_custom_call.1} parent=0
    _
  %s4 = ssub.s32 1, %s2
  %s5 = scalar_select 0, %s4, %s2
  $region1: #{tpu_custom_call.1} parent=0
    #allocation3 [shape = 'u8[8192]{0}', space=vmem, size = 0x2000, scoped, tag = 'input window, operand 0']
    #allocation4 [shape = 's32[2]{0}', space=sflag, size = 0x8, scoped, tag = 'scoped memory for tpu_custom_call.1']
    #allocation5 [shape = 's32[2]{0}', space=sflag, size = 0x8, scoped, tag = 'scoped memory for tpu_custom_call.1']
    #allocation6 [shape = 'u8[8192]{0}', space=vmem, size = 0x2000, scoped, tag = 'output window, operand 0']
    %6 = vsyncpa [#allocation4], 0
    %s7 = scalar_lea.sflag [#allocation4], 1
    %8 = vsyncpa %s7, 0
    %9 = vsyncpa [#allocation5], 0
    %s10 = scalar_lea.sflag [#allocation5], 1
    %11 = vsyncpa %s10, 0
    loop: start=0, step=1, limit=4
    $region2: #{tpu_custom_call.1} parent=1 // loop_pre_header
      _
    $region3: #{tpu_custom_call.1} parent=1 // loop_header
      %s13 = sphi 0, %s17
      %p14 = scmp.ge.s32.totalorder %s13, 4
      %s23 = sphi 0, %s25
      %s26 = sphi 0, %s23
      %s27 = sphi 0, %s26
      %s43 = sphi 0, %s27
      %s49 = sphi 0, %s51
      %s52 = sphi 0, %s49
      %s53 = sphi 0, %s52
      %s69 = sphi 0, %s53
    $region4: #{tpu_custom_call.1} parent=1 // loop_header_branch
      %16 = sbr.rel (%p14) target = $region8
    $region5: #{tpu_custom_call.1} parent=1 // loop_body
      %s18 = ssub.s32 %s13, 1
      %s19 = ssub.s32 %s13, 2
      %s20 = sadd.s32 %s13, 1
      %s21 = ssub.s32 %s13, %s20
      %p22 = scmp.eq.s32.totalorder %s21, 0
      %s24 = sadd.s32 %s23, 1
      %s25 = scalar_select %p22, %s23, %s24
      %p28 = pneg %p22
      %p29 = scmp.eq.s32.totalorder %s13, 1
      %p30 = por %p28, %p29
      %p31 = scmp.ne.s32.totalorder %s23, %s26
      %p32 = scmp.eq.s32.totalorder %s13, 0
      %p33 = por %p31, %p32
      %p34 = scmp.ne.s32.totalorder %s23, %s26
      %p35 = scmp.eq.s32.totalorder %s18, 1
      %p36 = por %p34, %p35
      %p37 = scmp.ne.s32.totalorder %s26, %s27
      %p38 = scmp.eq.s32.totalorder %s18, 0
      %p39 = por %p37, %p38
      %p40 = scmp.ne.s32.totalorder %s26, %s27
      %p41 = scmp.eq.s32.totalorder %s19, 1
      %p42 = por %p40, %p41
      %p44 = scmp.ne.s32.totalorder %s27, %s43
      %p45 = scmp.eq.s32.totalorder %s19, 0
      %p46 = por %p44, %p45
      %s47 = ssub.s32 %s13, %s20
      %p48 = scmp.eq.s32.totalorder %s47, 0
      %s50 = sadd.s32 %s49, 1
      %s51 = scalar_select %p48, %s49, %s50
      %p54 = pneg %p48
      %p55 = scmp.eq.s32.totalorder %s13, 1
      %p56 = por %p54, %p55
      %p57 = scmp.ne.s32.totalorder %s49, %s52
      %p58 = scmp.eq.s32.totalorder %s13, 0
      %p59 = por %p57, %p58
      %p60 = scmp.ne.s32.totalorder %s49, %s52
      %p61 = scmp.eq.s32.totalorder %s18, 1
      %p62 = por %p60, %p61
      %p63 = scmp.ne.s32.totalorder %s52, %s53
      %p64 = scmp.eq.s32.totalorder %s18, 0
      %p65 = por %p63, %p64
      %p66 = scmp.ne.s32.totalorder %s52, %s53
      %p67 = scmp.eq.s32.totalorder %s19, 1
      %p68 = por %p66, %p67
      %p70 = scmp.ne.s32.totalorder %s53, %s69
      %p71 = scmp.eq.s32.totalorder %s19, 0
      %p72 = por %p70, %p71
      %p73 = scmp.le.s32.totalorder 1, %s13
      %p74 = scmp.lt.s32.totalorder %s13, 3
      %p75 = pnand %p73, %p74
      %p76 = pneg %p75
      // Predicated region
      $region9: #{tpu_custom_call.1} parent=5 // pred_check
        _
      $region10: #{tpu_custom_call.1} parent=5 // pred_check_branch
        %78 = sbr.rel (%p75) target = $region12
      $region11: #{tpu_custom_call.1} parent=5 // pred_region
        %s79 = ssub.s32 %s13, 1
      $region12: #{tpu_custom_call.1} parent=5 // pred_fallthru
        _
      %p80 = scmp.lt.s32.totalorder %s13, 2
      // Predicated region
      $region13: #{tpu_custom_call.1} parent=5 // pred_check
        %p81 = pneg %p80
      $region14: #{tpu_custom_call.1} parent=5 // pred_check_branch
        %83 = sbr.rel (%p81) target = $region16
      $region15: #{tpu_custom_call.1} parent=5 // pred_region
        // Predicated region
        $region17: #{tpu_custom_call.1} parent=15 // pred_check
          %p84 = pneg %p33
        $region18: #{tpu_custom_call.1} parent=15 // pred_check_branch
          %86 = sbr.rel (%p84) target = $region20
        $region19: #{tpu_custom_call.1} parent=15 // pred_region
          %s87 = sand.u32 %s23, 1
          %s88 = scalar_lea.sflag [#allocation4], %s87
          %s89 = sand.u32 %s23, 1
          %s90 = smul.addr %s89, 8
          %s91 = scalar_lea.vmem [#allocation3], %s90
          %s93 = ssub.s32 128, 128
          %94 = vsyncadd %s88, %s93
          %s95 = smul.addr %s13, 128
          %s96 = scalar_lea.hbm %s0, %s95
          %s98 = sshll.u32 %s91, 4
          %s99 = int_to_ptr.vmem [resolvable:$true] %s98
          %101 = dma.hbm_to_vmem [thread:$0]  %s96, 128, %s99, %s88
        $region20: #{tpu_custom_call.1} parent=15 // pred_fallthru
          _
      $region16: #{tpu_custom_call.1} parent=5 // pred_fallthru
        _
      %p102 = scmp.le.s32.totalorder 1, %s13
      %p103 = scmp.lt.s32.totalorder %s13, 3
      %p104 = pnand %p102, %p103
      %p105 = pneg %p104
      // Predicated region
      $region21: #{tpu_custom_call.1} parent=5 // pred_check
        _
      $region22: #{tpu_custom_call.1} parent=5 // pred_check_branch
        %107 = sbr.rel (%p104) target = $region24
      $region23: #{tpu_custom_call.1} parent=5 // pred_region
        %s108 = ssub.s32 %s13, 1
        %s109 = sand.u32 %s26, 1
        %s110 = scalar_lea.sflag [#allocation4], %s109
        %s111 = sand.u32 %s26, 1
        %s112 = smul.addr %s111, 8
        %s113 = scalar_lea.vmem [#allocation3], %s112
        // Predicated region
        $region25: #{tpu_custom_call.1} parent=23 // pred_check
          %p114 = pneg %p39
        $region26: #{tpu_custom_call.1} parent=23 // pred_check_branch
          %116 = sbr.rel (%p114) target = $region28
        $region27: #{tpu_custom_call.1} parent=23 // pred_region
          %117 = dma.done %s110, 128
        $region28: #{tpu_custom_call.1} parent=23 // pred_fallthru
          _
        %s118 = sand.u32 %s26, 1
        %s119 = scalar_lea.sflag [#allocation4], %s118
        %s120 = sand.u32 %s26, 1
        %s121 = smul.addr %s120, 8
        %s122 = scalar_lea.vmem [#allocation3], %s121
        %p123 = pneg %p39
        %p124 = pneg %p36
        %p125 = pneg %p65
        %p126 = pneg %p62
        %s127 = sand.u32 %s52, 1
        %s128 = scalar_lea.sflag [#allocation5], %s127
        %s129 = sand.u32 %s52, 1
        %s130 = smul.addr %s129, 8
        %s131 = scalar_lea.vmem [#allocation6], %s130
        %v132 = vld [vmem:[%s113] sm:$0x1]
        %v133 = vld [vmem:[%s113 + $0x7] sm:$0x1]
        %v134 = vlaneseq
        %v135 = vshrl.u32 %v134, 7
        %v136 = vsub.s32 0, %v135
        %v137 = vrot.slane %v132, %v136
        %vm138 = vcmask 254976
        %139 = vst.msk [vmem:[#allocation2] sm:$0x3] %vm138, %v137
        %v140 = vlaneseq
        %v141 = vshrl.u32 %v140, 7
        %v142 = vsub.s32 0, %v141
        %v143 = vrot.slane %v133, %v142
        %144 = vst.msk [vmem:[#allocation2 + $0xa] sm:$0x3] %vm138, %v143
        %v145 = vld [vmem:[%s113] sm:$0xff]
        %vm146 = vcmask 261120
        %147 = vst.msk [vmem:[#allocation2 + $0x2] sm:$0xff] %vm146, %v145
        %v148 = vld [vmem:[#allocation2] sm:$0xff]
        %v149 = vadd.f32 %v148, 0.0
        %v150 = vld [vmem:[#allocation2 + $0x1] sm:$0xff]
        %v151 = vadd.f32 %v149, %v150
        %v152 = vld [vmem:[#allocation2 + $0x2] sm:$0xff]
        %v153 = vadd.f32 %v151, %v152
        %v154 = vld [vmem:[#allocation2 + $0x3] sm:$0xff]
        %v155 = vadd.f32 %v153, %v154
        %v156 = vld [vmem:[#allocation2 + $0x4] sm:$0xff]
        %v157 = vadd.f32 %v155, %v156
        %v158 = vmul.f32 %v157, 0.2
        %159 = vst.msk [vmem:[%s131] sm:$0xff] %vm146, %v158
        %s160 = sand.u32 %s52, 1
        %s161 = scalar_lea.sflag [#allocation5], %s160
        %s162 = sand.u32 %s52, 1
        %s163 = smul.addr %s162, 8
        %s164 = scalar_lea.vmem [#allocation6], %s163
        // Predicated region
        $region29: #{tpu_custom_call.1} parent=23 // pred_check
          %p165 = pneg %p62
        $region30: #{tpu_custom_call.1} parent=23 // pred_check_branch
          %167 = sbr.rel (%p165) target = $region32
        $region31: #{tpu_custom_call.1} parent=23 // pred_region
          %s169 = ssub.s32 128, 128
          %170 = vsyncadd %s161, %s169
          %s171 = smul.addr %s18, 128
          %s172 = scalar_lea.hbm %s1, %s171
          %s174 = sshll.u32 %s164, 4
          %s175 = int_to_ptr.vmem [resolvable:$true] %s174
          %177 = dma.vmem_to_hbm [thread:$0]  %s175, 128, %s172, %s161
        $region32: #{tpu_custom_call.1} parent=23 // pred_fallthru
          _
      $region24: #{tpu_custom_call.1} parent=5 // pred_fallthru
        _
      %p178 = scmp.le.s32.totalorder 2, %s13
      // Predicated region
      $region33: #{tpu_custom_call.1} parent=5 // pred_check
        %p179 = pneg %p178
      $region34: #{tpu_custom_call.1} parent=5 // pred_check_branch
        %181 = sbr.rel (%p179) target = $region36
      $region35: #{tpu_custom_call.1} parent=5 // pred_region
        %s182 = ssub.s32 %s13, 2
        // Predicated region
        $region37: #{tpu_custom_call.1} parent=35 // pred_check
          %p183 = pneg %p68
        $region38: #{tpu_custom_call.1} parent=35 // pred_check_branch
          %185 = sbr.rel (%p183) target = $region40
        $region39: #{tpu_custom_call.1} parent=35 // pred_region
          %s186 = sand.u32 %s53, 1
          %s187 = scalar_lea.sflag [#allocation5], %s186
          %s188 = sand.u32 %s53, 1
          %s189 = smul.addr %s188, 8
          %s190 = scalar_lea.vmem [#allocation6], %s189
          %191 = dma.done %s187, 128
        $region40: #{tpu_custom_call.1} parent=35 // pred_fallthru
          _
      $region36: #{tpu_custom_call.1} parent=5 // pred_fallthru
        _
    $region6: #{tpu_custom_call.1} parent=1 // loop_footer
      %s17 = sadd.s32 1, %s13
    $region7: #{tpu_custom_call.1} parent=1 // loop_footer_branch
      %12 = sbr.rel target = $region3
    $region8: #{tpu_custom_call.1} parent=1 // loop_exit
      _
    %192 = vsyncpa [#allocation4], 1
    %s193 = scalar_lea.sflag [#allocation4], 1
    %194 = vsyncpa %s193, 1
    %195 = vsyncpa [#allocation5], 1
    %s196 = scalar_lea.sflag [#allocation5], 1
    %197 = vsyncpa %s196, 1

</llo_original>
